<compile_context>
chip_gen: v7x
topology: tpu7x:2x2x1
jax: 0.10.0
libtpu: 0.0.40
codegen_flags: <defaults>
</compile_context>

<pallas_src>
import functools
import math

import jax
import jax.numpy as jnp
from jax import lax
from jax.experimental import pallas as pl
from jax.experimental.pallas import tpu as pltpu

# ---------------- config (small, consistent with the module) ----------------
BATCH = 2
SEQ = 8
DIM_MODEL = 32
NUM_HEADS = 4
DIM_K = 16
DIM_V = 16
CAUSAL = False     # EncoderAttention builds MultiQueryAttention(config, causal=False)
LANES = 128        # lane-dense padding width


# ------------------------------- kernel -------------------------------------
def mqa_fused_kernel(x_ref, w_ref, b_ref, out_ref, *,
                     batch, seq, num_heads, dim_k, dim_v, dim_model, causal):
    B, S, H, dk, dv, Dm = batch, seq, num_heads, dim_k, dim_v, dim_model
    f32 = jnp.float32
    bf16 = jnp.bfloat16

    # ONE fused Q/K/V projection (128-deep contraction, single MXU push):
    #   x_bd (B*H*S, H*Dm=128) @ W_proj (128, 128) -> (B*H*S, 128) f32
    # lanes [0:dk)      = head-major Q (scale folded into weights/bias)
    # lanes [dk:2dk)    = shared K (valid on every head-row; we use head 0)
    # lanes [2dk:2dk+dv)= shared V
    qkv = jnp.dot(x_ref[...], w_ref[0:H * Dm, :], preferred_element_type=f32)
    qkv = qkv + b_ref[0:B * H * S, :]          # fused q/k/v bias add (pre-scaled bq)

    if causal:
        # head-major rows within a batch block: query position = row % S.
        # finite negative avoids inf-inf -> NaN on fully-masked rows.
        qpos = lax.broadcasted_iota(jnp.int32, (H * S, S), 0) % S
        kpos = lax.broadcasted_iota(jnp.int32, (H * S, S), 1)
        neg_big = jnp.float32(-1e30)

    bo = b_ref[B * H * S:B * H * S + 1, :]     # (1, 128) lane-padded output bias

    # B is tiny; batch stays a static loop (move to a grid axis if B grows).
    for b in range(B):
        blk = qkv[b * H * S:(b + 1) * H * S, :]             # (H*S, 128) f32
        q_hm = blk[:, 0:dk].astype(bf16)                    # (H*S, dk) head-major
        kb = blk[0:S, dk:2 * dk].astype(bf16)               # (S, dk) shared K
        vb = blk[0:S, 2 * dk:2 * dk + dv].astype(bf16)      # (S, dv) shared V

        # scores for all heads in ONE push; contract dk-with-dk (no explicit k.T)
        s = lax.dot_general(q_hm, kb, (((1,), (1,)), ((), ())),
                            preferred_element_type=f32)     # (H*S, S)
        if causal:
            s = jnp.where(kpos > qpos, neg_big, s)

        # softmax along keys, f32 math; denominator via EUP approx reciprocal.
        m = jnp.max(s, axis=-1, keepdims=True)
        p = jnp.exp(s - m)
        inv_l = pl.reciprocal(jnp.sum(p, axis=-1, keepdims=True), approx=True)
        w = (p * inv_l).astype(bf16)                         # (H*S, S)

        # PV for all heads in one push (K/V shared across heads: multi-query).
        a = jnp.dot(w, vb, preferred_element_type=f32)       # (H*S, dv) f32

        # output projection: per-head sublane-sliced accumulation against a
        # lane-padded Wo -> no lane concat, full-128-lane unmasked stores.
        acc = bo
        for h in range(H):
            a_h = a[h * S:(h + 1) * S, :].astype(bf16)                   # (S, dv)
            wo_h = w_ref[H * Dm + h * dv:H * Dm + (h + 1) * dv, :]       # (dv, 128)
            acc = acc + jnp.dot(a_h, wo_h, preferred_element_type=f32)   # (S, 128)
        out_ref[b * S:(b + 1) * S, :] = acc


# --------------------------- parameter packing --------------------------------
def _pack_params(params):
    """Pack 9 small parameters into 2 contiguous 128-lane slabs (2 DMAs)."""
    H, dk, dv, Dm, S, B = NUM_HEADS, DIM_K, DIM_V, DIM_MODEL, SEQ, BATCH
    scale = 1.0 / math.sqrt(dk)

    # --- bf16 weight slab (192, 128): [ W_proj ; lane-padded Wo ] ---
    wq_bd = (params["wq"] * scale).reshape(Dm, H, dk).transpose(1, 0, 2)
    wq_bd = wq_bd.reshape(H * Dm, dk)                 # block-diag Q (head-major out)
    wk_t = jnp.tile(params["wk"], (H, 1))             # (H*Dm, dk) shared K
    wv_t = jnp.tile(params["wv"], (H, 1))             # (H*Dm, dv) shared V
    w_proj = jnp.concatenate([wq_bd, wk_t, wv_t], axis=1)          # (128, 2dk+dv)
    w_proj = jnp.pad(w_proj, ((0, 0), (0, LANES - w_proj.shape[1])))
    wo_pad = jnp.pad(params["wo"], ((0, 0), (0, LANES - Dm)))      # (H*dv, 128)
    w_slab = jnp.concatenate([w_proj, wo_pad], axis=0).astype(jnp.bfloat16)

    # --- f32 bias slab (72, 128): rows [0:B*H*S) = tiled qkv bias, row B*H*S = bo ---
    bq_rows = jnp.broadcast_to((params["bq"] * scale).reshape(H, 1, dk),
                               (H, S, dk)).reshape(H * S, dk)       # head-major bq
    bk_rows = jnp.broadcast_to(params["bk"], (H * S, dk))
    bv_rows = jnp.broadcast_to(params["bv"], (H * S, dv))
    b_qkv = jnp.concatenate([bq_rows, bk_rows, bv_rows], axis=1)    # (H*S, 2dk+dv)
    b_qkv = jnp.pad(b_qkv, ((0, 0), (0, LANES - b_qkv.shape[1])))
    b_qkv = jnp.tile(b_qkv, (B, 1))                                 # (B*H*S, 128)
    bo_pad = jnp.pad(params["bo"], ((0, 0), (0, LANES - Dm)))       # (1, 128)
    b_slab = jnp.concatenate([b_qkv, bo_pad], axis=0)
    b_slab = jnp.pad(b_slab, ((0, (-b_slab.shape[0]) % 8), (0, 0))).astype(jnp.float32)
    return w_slab, b_slab


# ------------------------------- wrapper -------------------------------------
def encoder_attention_mqa(x, params):
    """x: (B, S, Dm) -> (B, S, Dm). Self-attention, MQA, non-causal."""
    B, S, Dm = x.shape
    H, dk, dv = NUM_HEADS, DIM_K, DIM_V

    # Block-diagonal layout plumbing (wrapper/XLA side, no in-kernel shuffles):
    # row (b,h,s) carries x[b,s] in column block h, zeros elsewhere -> a single
    # 128-deep matmul emits head-major Q and the shared K/V.
    eye = jnp.eye(H, dtype=x.dtype)
    x_bd = (x[:, None, :, None, :] * eye[None, :, None, :, None])
    x_bd = x_bd.reshape(B * H * S, H * Dm).astype(jnp.bfloat16)

    w_slab, b_slab = _pack_params(params)

    kernel = functools.partial(mqa_fused_kernel, batch=B, seq=S, num_heads=H,
                               dim_k=dk, dim_v=dv, dim_model=Dm, causal=CAUSAL)

    out_pad = pl.pallas_call(
        kernel,
        out_shape=jax.ShapeDtypeStruct((B * S, LANES), jnp.float32),  # lane-dense
        grid=(1,),   # toy size: one invocation; expose parallel axes when B/S grow
        in_specs=[
            pl.BlockSpec((B * H * S, H * Dm), lambda i: (0, 0)),   # x_bd (bf16)
            pl.BlockSpec(w_slab.shape, lambda i: (0, 0)),          # weight slab (bf16)
            pl.BlockSpec(b_slab.shape, lambda i: (0, 0)),          # bias slab (f32)
        ],
        out_specs=pl.BlockSpec((B * S, LANES), lambda i: (0, 0)),
        compiler_params=pltpu.CompilerParams(
            dimension_semantics=("arbitrary",)),
    )(x_bd, w_slab, b_slab)

    return out_pad[:, :Dm].reshape(B, S, Dm)


# -------------------------- pure-JAX reference --------------------------------
def mqa_reference(x, params):
    B, S, Dm = x.shape
    q = (x @ params["wq"] + params["bq"]).reshape(B, S, NUM_HEADS, DIM_K)
    q = q.transpose(0, 2, 1, 3)                                # (B, H, S, dk)
    k = x @ params["wk"] + params["bk"]                        # (B, S, dk)
    v = x @ params["wv"] + params["bv"]                        # (B, S, dv)
    s = jnp.einsum("bhqd,bkd->bhqk", q, k) / math.sqrt(DIM_K)
    if CAUSAL:
        cm = jnp.triu(jnp.ones((S, S), bool), k=1)
        s = jnp.where(cm[None, None], -1e30, s)
    w = jax.nn.softmax(s, axis=-1)
    a = jnp.einsum("bhqk,bkd->bhqd", w, v)                     # (B, H, S, dv)
    a = a.transpose(0, 2, 1, 3).reshape(B, S, NUM_HEADS * DIM_V)
    return a @ params["wo"] + params["bo"]


# ------------------------------- main -----------------------------------------
def init_params(key):
    ks = jax.random.split(key, 8)

    def lin(kw, kb, fan_in, fan_out):
        bound = 1.0 / math.sqrt(fan_in)
        w = jax.random.uniform(kw, (fan_in, fan_out), jnp.float32, -bound, bound)
        b = jax.random.uniform(kb, (1, fan_out), jnp.float32, -bound, bound)
        return w, b

    wq, bq = lin(ks[0], ks[1], DIM_MODEL, DIM_K * NUM_HEADS)
    wk, bk = lin(ks[2], ks[3], DIM_MODEL, DIM_K)
    wv, bv = lin(ks[4], ks[5], DIM_MODEL, DIM_V)
    wo, bo = lin(ks[6], ks[7], DIM_V * NUM_HEADS, DIM_MODEL)
    return dict(wq=wq, bq=bq, wk=wk, bk=bk, wv=wv, bv=bv, wo=wo, bo=bo)


if __name__ == "__main__":
    key = jax.random.PRNGKey(0)
    kp, kx = jax.random.split(key, 2)
    params = init_params(kp)

    x = jax.random.normal(kx, (BATCH, SEQ, DIM_MODEL), jnp.float32)

    out = encoder_attention_mqa(x, params)
    out = jax.block_until_ready(out)

    ref = mqa_reference(x, params)
    assert out.shape == (BATCH, SEQ, DIM_MODEL)
    # bf16 MXU operands + approx reciprocal -> loosened tolerance vs f32 reference
    assert jnp.allclose(out, ref, atol=2e-2, rtol=2e-2), "mismatch vs JAX reference"

    print("KERNEL_OK")
</pallas_src>

<mosaic_0001>
module attributes {stable_mosaic.version = 11 : i64} {
  func.func @mqa_fused_kernel(%arg0: i32, %arg1: memref<64x128xbf16, #tpu.memory_space<vmem>>, %arg2: memref<192x128xbf16, #tpu.memory_space<vmem>>, %arg3: memref<72x128xf32, #tpu.memory_space<vmem>>, %arg4: memref<16x128xf32, #tpu.memory_space<vmem>>) attributes {dimension_semantics = [#tpu.dimension_semantics<arbitrary>], iteration_bounds = array<i64: 1>, scalar_prefetch = 0 : i64, scratch_operands = 0 : i64, tpu.core_type = #tpu.core_type<tc>, window_params = [{pipeline_mode = #tpu.pipeline_mode<synchronous>, transform_indices = @transform_0, window_bounds = array<i64: 64, 128>}, {pipeline_mode = #tpu.pipeline_mode<synchronous>, transform_indices = @transform_1, window_bounds = array<i64: 192, 128>}, {pipeline_mode = #tpu.pipeline_mode<synchronous>, transform_indices = @transform_2, window_bounds = array<i64: 72, 128>}, {pipeline_mode = #tpu.pipeline_mode<synchronous>, transform_indices = @transform_3, window_bounds = array<i64: 16, 128>}]} {
    %c0 = arith.constant 0 : index
    %c0_0 = arith.constant 0 : index
    %0 = vector.load %arg1[%c0, %c0_0] : memref<64x128xbf16, #tpu.memory_space<vmem>>, vector<64x128xbf16>
    %c0_1 = arith.constant 0 : index
    %c0_2 = arith.constant 0 : index
    %1 = vector.load %arg2[%c0_1, %c0_2] : memref<192x128xbf16, #tpu.memory_space<vmem>>, vector<128x128xbf16>
    %cst = arith.constant dense<0.000000e+00> : vector<64x128xf32>
    %2 = tpu.matmul %0, %1, %cst {dimension_numbers = #tpu.dot_dimension_numbers<[1], [0], [0], [1], [0, 0, 1, 1], [], []>} : vector<64x128xbf16>, vector<128x128xbf16>, vector<64x128xf32> -> vector<64x128xf32>
    %c0_3 = arith.constant 0 : index
    %c0_4 = arith.constant 0 : index
    %3 = vector.load %arg3[%c0_3, %c0_4] : memref<72x128xf32, #tpu.memory_space<vmem>>, vector<64x128xf32>
    %4 = arith.addf %2, %3 : vector<64x128xf32>
    %c64 = arith.constant 64 : index
    %c0_5 = arith.constant 0 : index
    %5 = vector.load %arg3[%c64, %c0_5] : memref<72x128xf32, #tpu.memory_space<vmem>>, vector<1x128xf32>
    %6 = vector.extract_strided_slice %4 {offsets = [0, 0], sizes = [32, 128], strides = [1, 1]} : vector<64x128xf32> to vector<32x128xf32>
    %7 = vector.extract_strided_slice %6 {offsets = [0, 0], sizes = [32, 16], strides = [1, 1]} : vector<32x128xf32> to vector<32x16xf32>
    %8 = arith.truncf %7 : vector<32x16xf32> to vector<32x16xbf16>
    %9 = vector.extract_strided_slice %6 {offsets = [0, 16], sizes = [8, 16], strides = [1, 1]} : vector<32x128xf32> to vector<8x16xf32>
    %10 = arith.truncf %9 : vector<8x16xf32> to vector<8x16xbf16>
    %11 = vector.extract_strided_slice %6 {offsets = [0, 32], sizes = [8, 16], strides = [1, 1]} : vector<32x128xf32> to vector<8x16xf32>
    %12 = arith.truncf %11 : vector<8x16xf32> to vector<8x16xbf16>
    %cst_6 = arith.constant dense<0.000000e+00> : vector<32x8xf32>
    %13 = tpu.matmul %8, %10, %cst_6 {dimension_numbers = #tpu.dot_dimension_numbers<[1], [1], [0], [0], [0, 0, 1, 0], [], []>} : vector<32x16xbf16>, vector<8x16xbf16>, vector<32x8xf32> -> vector<32x8xf32>
    %cst_7 = arith.constant dense<0xFF800000> : vector<32xf32>
    %14 = vector.multi_reduction <maximumf>, %13, %cst_7 [1] : vector<32x8xf32> to vector<32xf32>
    %15 = vector.shape_cast %14 : vector<32xf32> to vector<32x1xf32>
    %16 = vector.broadcast %15 : vector<32x1xf32> to vector<32x8xf32>
    %17 = arith.subf %13, %16 : vector<32x8xf32>
    %18 = math.exp %17 : vector<32x8xf32>
    %cst_8 = arith.constant dense<0.000000e+00> : vector<32xf32>
    %19 = vector.multi_reduction <add>, %18, %cst_8 [1] : vector<32x8xf32> to vector<32xf32>
    %20 = vector.shape_cast %19 : vector<32xf32> to vector<32x1xf32>
    %21 = tpu.reciprocal %20 {approx = true} : vector<32x1xf32> -> vector<32x1xf32>
    %22 = vector.broadcast %21 : vector<32x1xf32> to vector<32x8xf32>
    %23 = arith.mulf %18, %22 : vector<32x8xf32>
    %24 = arith.truncf %23 : vector<32x8xf32> to vector<32x8xbf16>
    %cst_9 = arith.constant dense<0.000000e+00> : vector<32x16xf32>
    %25 = tpu.matmul %24, %12, %cst_9 {dimension_numbers = #tpu.dot_dimension_numbers<[1], [0], [0], [1], [0, 0, 1, 1], [], []>} : vector<32x8xbf16>, vector<8x16xbf16>, vector<32x16xf32> -> vector<32x16xf32>
    %26 = vector.extract_strided_slice %25 {offsets = [0, 0], sizes = [8, 16], strides = [1, 1]} : vector<32x16xf32> to vector<8x16xf32>
    %27 = arith.truncf %26 : vector<8x16xf32> to vector<8x16xbf16>
    %c128 = arith.constant 128 : index
    %c0_10 = arith.constant 0 : index
    %28 = vector.load %arg2[%c128, %c0_10] : memref<192x128xbf16, #tpu.memory_space<vmem>>, vector<16x128xbf16>
    %cst_11 = arith.constant dense<0.000000e+00> : vector<8x128xf32>
    %29 = tpu.matmul %27, %28, %cst_11 {dimension_numbers = #tpu.dot_dimension_numbers<[1], [0], [0], [1], [0, 0, 1, 1], [], []>} : vector<8x16xbf16>, vector<16x128xbf16>, vector<8x128xf32> -> vector<8x128xf32>
    %30 = vector.broadcast %5 : vector<1x128xf32> to vector<8x128xf32>
    %31 = arith.addf %30, %29 : vector<8x128xf32>
    %32 = vector.extract_strided_slice %25 {offsets = [8, 0], sizes = [8, 16], strides = [1, 1]} : vector<32x16xf32> to vector<8x16xf32>
    %33 = arith.truncf %32 : vector<8x16xf32> to vector<8x16xbf16>
    %c144 = arith.constant 144 : index
    %c0_12 = arith.constant 0 : index
    %34 = vector.load %arg2[%c144, %c0_12] : memref<192x128xbf16, #tpu.memory_space<vmem>>, vector<16x128xbf16>
    %cst_13 = arith.constant dense<0.000000e+00> : vector<8x128xf32>
    %35 = tpu.matmul %33, %34, %cst_13 {dimension_numbers = #tpu.dot_dimension_numbers<[1], [0], [0], [1], [0, 0, 1, 1], [], []>} : vector<8x16xbf16>, vector<16x128xbf16>, vector<8x128xf32> -> vector<8x128xf32>
    %36 = arith.addf %31, %35 : vector<8x128xf32>
    %37 = vector.extract_strided_slice %25 {offsets = [16, 0], sizes = [8, 16], strides = [1, 1]} : vector<32x16xf32> to vector<8x16xf32>
    %38 = arith.truncf %37 : vector<8x16xf32> to vector<8x16xbf16>
    %c160 = arith.constant 160 : index
    %c0_14 = arith.constant 0 : index
    %39 = vector.load %arg2[%c160, %c0_14] : memref<192x128xbf16, #tpu.memory_space<vmem>>, vector<16x128xbf16>
    %cst_15 = arith.constant dense<0.000000e+00> : vector<8x128xf32>
    %40 = tpu.matmul %38, %39, %cst_15 {dimension_numbers = #tpu.dot_dimension_numbers<[1], [0], [0], [1], [0, 0, 1, 1], [], []>} : vector<8x16xbf16>, vector<16x128xbf16>, vector<8x128xf32> -> vector<8x128xf32>
    %41 = arith.addf %36, %40 : vector<8x128xf32>
    %42 = vector.extract_strided_slice %25 {offsets = [24, 0], sizes = [8, 16], strides = [1, 1]} : vector<32x16xf32> to vector<8x16xf32>
    %43 = arith.truncf %42 : vector<8x16xf32> to vector<8x16xbf16>
    %c176 = arith.constant 176 : index
    %c0_16 = arith.constant 0 : index
    %44 = vector.load %arg2[%c176, %c0_16] : memref<192x128xbf16, #tpu.memory_space<vmem>>, vector<16x128xbf16>
    %cst_17 = arith.constant dense<0.000000e+00> : vector<8x128xf32>
    %45 = tpu.matmul %43, %44, %cst_17 {dimension_numbers = #tpu.dot_dimension_numbers<[1], [0], [0], [1], [0, 0, 1, 1], [], []>} : vector<8x16xbf16>, vector<16x128xbf16>, vector<8x128xf32> -> vector<8x128xf32>
    %46 = arith.addf %41, %45 : vector<8x128xf32>
    %c0_18 = arith.constant 0 : index
    %c0_19 = arith.constant 0 : index
    %47 = vector.load %arg4[%c0_18, %c0_19] : memref<16x128xf32, #tpu.memory_space<vmem>>, vector<8x128xf32>
    tpu.vector_store %arg4[%c0_18, %c0_19], %46 {strides = array<i32>} : memref<16x128xf32, #tpu.memory_space<vmem>>, vector<8x128xf32>,
    %48 = vector.extract_strided_slice %4 {offsets = [32, 0], sizes = [32, 128], strides = [1, 1]} : vector<64x128xf32> to vector<32x128xf32>
    %49 = vector.extract_strided_slice %48 {offsets = [0, 0], sizes = [32, 16], strides = [1, 1]} : vector<32x128xf32> to vector<32x16xf32>
    %50 = arith.truncf %49 : vector<32x16xf32> to vector<32x16xbf16>
    %51 = vector.extract_strided_slice %48 {offsets = [0, 16], sizes = [8, 16], strides = [1, 1]} : vector<32x128xf32> to vector<8x16xf32>
    %52 = arith.truncf %51 : vector<8x16xf32> to vector<8x16xbf16>
    %53 = vector.extract_strided_slice %48 {offsets = [0, 32], sizes = [8, 16], strides = [1, 1]} : vector<32x128xf32> to vector<8x16xf32>
    %54 = arith.truncf %53 : vector<8x16xf32> to vector<8x16xbf16>
    %cst_20 = arith.constant dense<0.000000e+00> : vector<32x8xf32>
    %55 = tpu.matmul %50, %52, %cst_20 {dimension_numbers = #tpu.dot_dimension_numbers<[1], [1], [0], [0], [0, 0, 1, 0], [], []>} : vector<32x16xbf16>, vector<8x16xbf16>, vector<32x8xf32> -> vector<32x8xf32>
    %cst_21 = arith.constant dense<0xFF800000> : vector<32xf32>
    %56 = vector.multi_reduction <maximumf>, %55, %cst_21 [1] : vector<32x8xf32> to vector<32xf32>
    %57 = vector.shape_cast %56 : vector<32xf32> to vector<32x1xf32>
    %58 = vector.broadcast %57 : vector<32x1xf32> to vector<32x8xf32>
    %59 = arith.subf %55, %58 : vector<32x8xf32>
    %60 = math.exp %59 : vector<32x8xf32>
    %cst_22 = arith.constant dense<0.000000e+00> : vector<32xf32>
    %61 = vector.multi_reduction <add>, %60, %cst_22 [1] : vector<32x8xf32> to vector<32xf32>
    %62 = vector.shape_cast %61 : vector<32xf32> to vector<32x1xf32>
    %63 = tpu.reciprocal %62 {approx = true} : vector<32x1xf32> -> vector<32x1xf32>
    %64 = vector.broadcast %63 : vector<32x1xf32> to vector<32x8xf32>
    %65 = arith.mulf %60, %64 : vector<32x8xf32>
    %66 = arith.truncf %65 : vector<32x8xf32> to vector<32x8xbf16>
    %cst_23 = arith.constant dense<0.000000e+00> : vector<32x16xf32>
    %67 = tpu.matmul %66, %54, %cst_23 {dimension_numbers = #tpu.dot_dimension_numbers<[1], [0], [0], [1], [0, 0, 1, 1], [], []>} : vector<32x8xbf16>, vector<8x16xbf16>, vector<32x16xf32> -> vector<32x16xf32>
    %68 = vector.extract_strided_slice %67 {offsets = [0, 0], sizes = [8, 16], strides = [1, 1]} : vector<32x16xf32> to vector<8x16xf32>
    %69 = arith.truncf %68 : vector<8x16xf32> to vector<8x16xbf16>
    %c128_24 = arith.constant 128 : index
    %c0_25 = arith.constant 0 : index
    %70 = vector.load %arg2[%c128_24, %c0_25] : memref<192x128xbf16, #tpu.memory_space<vmem>>, vector<16x128xbf16>
    %cst_26 = arith.constant dense<0.000000e+00> : vector<8x128xf32>
    %71 = tpu.matmul %69, %70, %cst_26 {dimension_numbers = #tpu.dot_dimension_numbers<[1], [0], [0], [1], [0, 0, 1, 1], [], []>} : vector<8x16xbf16>, vector<16x128xbf16>, vector<8x128xf32> -> vector<8x128xf32>
    %72 = vector.broadcast %5 : vector<1x128xf32> to vector<8x128xf32>
    %73 = arith.addf %72, %71 : vector<8x128xf32>
    %74 = vector.extract_strided_slice %67 {offsets = [8, 0], sizes = [8, 16], strides = [1, 1]} : vector<32x16xf32> to vector<8x16xf32>
    %75 = arith.truncf %74 : vector<8x16xf32> to vector<8x16xbf16>
    %c144_27 = arith.constant 144 : index
    %c0_28 = arith.constant 0 : index
    %76 = vector.load %arg2[%c144_27, %c0_28] : memref<192x128xbf16, #tpu.memory_space<vmem>>, vector<16x128xbf16>
    %cst_29 = arith.constant dense<0.000000e+00> : vector<8x128xf32>
    %77 = tpu.matmul %75, %76, %cst_29 {dimension_numbers = #tpu.dot_dimension_numbers<[1], [0], [0], [1], [0, 0, 1, 1], [], []>} : vector<8x16xbf16>, vector<16x128xbf16>, vector<8x128xf32> -> vector<8x128xf32>
    %78 = arith.addf %73, %77 : vector<8x128xf32>
    %79 = vector.extract_strided_slice %67 {offsets = [16, 0], sizes = [8, 16], strides = [1, 1]} : vector<32x16xf32> to vector<8x16xf32>
    %80 = arith.truncf %79 : vector<8x16xf32> to vector<8x16xbf16>
    %c160_30 = arith.constant 160 : index
    %c0_31 = arith.constant 0 : index
    %81 = vector.load %arg2[%c160_30, %c0_31] : memref<192x128xbf16, #tpu.memory_space<vmem>>, vector<16x128xbf16>
    %cst_32 = arith.constant dense<0.000000e+00> : vector<8x128xf32>
    %82 = tpu.matmul %80, %81, %cst_32 {dimension_numbers = #tpu.dot_dimension_numbers<[1], [0], [0], [1], [0, 0, 1, 1], [], []>} : vector<8x16xbf16>, vector<16x128xbf16>, vector<8x128xf32> -> vector<8x128xf32>
    %83 = arith.addf %78, %82 : vector<8x128xf32>
    %84 = vector.extract_strided_slice %67 {offsets = [24, 0], sizes = [8, 16], strides = [1, 1]} : vector<32x16xf32> to vector<8x16xf32>
    %85 = arith.truncf %84 : vector<8x16xf32> to vector<8x16xbf16>
    %c176_33 = arith.constant 176 : index
    %c0_34 = arith.constant 0 : index
    %86 = vector.load %arg2[%c176_33, %c0_34] : memref<192x128xbf16, #tpu.memory_space<vmem>>, vector<16x128xbf16>
    %cst_35 = arith.constant dense<0.000000e+00> : vector<8x128xf32>
    %87 = tpu.matmul %85, %86, %cst_35 {dimension_numbers = #tpu.dot_dimension_numbers<[1], [0], [0], [1], [0, 0, 1, 1], [], []>} : vector<8x16xbf16>, vector<16x128xbf16>, vector<8x128xf32> -> vector<8x128xf32>
    %88 = arith.addf %83, %87 : vector<8x128xf32>
    %c8 = arith.constant 8 : index
    %c0_36 = arith.constant 0 : index
    %89 = vector.load %arg4[%c8, %c0_36] : memref<16x128xf32, #tpu.memory_space<vmem>>, vector<8x128xf32>
    tpu.vector_store %arg4[%c8, %c0_36], %88 {strides = array<i32>} : memref<16x128xf32, #tpu.memory_space<vmem>>, vector<8x128xf32>,
    return
  }
  func.func @transform_0(%arg0: i32) -> (i32, i32) {
    %c0_i32 = arith.constant 0 : i32
    %c0_i32_0 = arith.constant 0 : i32
    %c0_i32_1 = arith.constant 0 : i32
    return %c0_i32, %c0_i32_0 : i32, i32
  }
  func.func @transform_1(%arg0: i32) -> (i32, i32) {
    %c0_i32 = arith.constant 0 : i32
    %c0_i32_0 = arith.constant 0 : i32
    %c0_i32_1 = arith.constant 0 : i32
    return %c0_i32, %c0_i32_0 : i32, i32
  }
  func.func @transform_2(%arg0: i32) -> (i32, i32) {
    %c0_i32 = arith.constant 0 : i32
    %c0_i32_0 = arith.constant 0 : i32
    %c0_i32_1 = arith.constant 0 : i32
    return %c0_i32, %c0_i32_0 : i32, i32
  }
  func.func @transform_3(%arg0: i32) -> (i32, i32) {
    %c0_i32 = arith.constant 0 : i32
    %c0_i32_0 = arith.constant 0 : i32
    %c0_i32_1 = arith.constant 0 : i32
    return %c0_i32, %c0_i32_0 : i32, i32
  }
}

</mosaic_0001>

<llo_original>
// kernel: tpu_custom_call.1
$region0: #{tpu_custom_call.1}
  #allocation0 [shape = 'u32[]', space=smem, size = 0x4, offset = 0x4, fixed_abs, tag = 'smem constant byte address 0x4 - core index']
  #allocation1 [shape = 'u32[144,128]{1,0:T(1,128)}', space=vmem, size = 0x12000, scoped, tag = 'internal scratch']
  %s0 = inlined_call_operand.hbm [shape: bf16[64,128], index: 0, kind: input, shape index: {}]
  %s1 = inlined_call_operand.hbm [shape: bf16[192,128], index: 1, kind: input, shape index: {}]
  %s2 = inlined_call_operand.hbm [shape: f32[72,128], index: 2, kind: input, shape index: {}]
  %s3 = inlined_call_operand.hbm [shape: f32[16,128], index: 3, kind: output, shape index: {}]
  %s4 = sld [smem:[#allocation0]]
  $region34: #{tpu_custom_call.1} parent=0
    _
  %s6 = ssub.s32 1, %s4
  %s7 = scalar_select 0, %s6, %s4
  $region1: #{tpu_custom_call.1} parent=0
    #allocation2 [shape = 'u8[16384]{0}', space=vmem, size = 0x4000, scoped, tag = 'input window, operand 0, single buffered']
    #allocation3 [shape = 's32[1]{0}', space=sflag, size = 0x4, scoped, tag = 'scoped memory for tpu_custom_call.1']
    #allocation4 [shape = 's32[1]{0}', space=sflag, size = 0x4, scoped, tag = 'scoped memory for tpu_custom_call.1']
    #allocation5 [shape = 'u8[49152]{0}', space=vmem, size = 0xc000, scoped, tag = 'input window, operand 1, single buffered']
    #allocation6 [shape = 's32[1]{0}', space=sflag, size = 0x4, scoped, tag = 'scoped memory for tpu_custom_call.1']
    #allocation7 [shape = 'u8[36864]{0}', space=vmem, size = 0x9000, scoped, tag = 'input window, operand 2, single buffered']
    #allocation8 [shape = 'u8[8192]{0}', space=vmem, size = 0x2000, scoped, tag = 'output window, operand 0, single buffered']
    %8 = vsyncpa [#allocation3], 0
    %9 = vsyncpa [#allocation6], 0
    %10 = vsyncpa [#allocation4], 0
    // Predicated region
    $region2: #{tpu_custom_call.1} parent=1 // pred_check
      _
    $region3: #{tpu_custom_call.1} parent=1 // pred_check_branch
      %12 = sbr.rel (0) target = $region5
    $region4: #{tpu_custom_call.1} parent=1 // pred_region
      %s14 = ssub.s32 512, 512
      %15 = vsyncadd [#allocation3], %s14
      %s16 = sshll.u32 [#allocation2], 4
      %s17 = int_to_ptr.vmem [resolvable:$true] %s16
      %22 = dma.hbm_to_vmem [thread:$0]  %s0, 512, %s17, [#allocation3], 64, 64, 4
    $region5: #{tpu_custom_call.1} parent=1 // pred_fallthru
      _
    // Predicated region
    $region6: #{tpu_custom_call.1} parent=1 // pred_check
      _
    $region7: #{tpu_custom_call.1} parent=1 // pred_check_branch
      %24 = sbr.rel (0) target = $region9
    $region8: #{tpu_custom_call.1} parent=1 // pred_region
      %s26 = ssub.s32 1536, 1536
      %27 = vsyncadd [#allocation6], %s26
      %s28 = sshll.u32 [#allocation5], 4
      %s29 = int_to_ptr.vmem [resolvable:$true] %s28
      %34 = dma.hbm_to_vmem [thread:$0]  %s1, 1536, %s29, [#allocation6], 64, 64, 4
    $region9: #{tpu_custom_call.1} parent=1 // pred_fallthru
      _
    // Predicated region
    $region10: #{tpu_custom_call.1} parent=1 // pred_check
      _
    $region11: #{tpu_custom_call.1} parent=1 // pred_check_branch
      %36 = sbr.rel (0) target = $region13
    $region12: #{tpu_custom_call.1} parent=1 // pred_region
      %s38 = ssub.s32 1152, 1152
      %39 = vsyncadd [#allocation6], %s38
      %s40 = sshll.u32 [#allocation7], 4
      %s41 = int_to_ptr.vmem [resolvable:$true] %s40
      %46 = dma.hbm_to_vmem [thread:$0]  %s2, 1152, %s41, [#allocation6], 128, 128, 8
    $region13: #{tpu_custom_call.1} parent=1 // pred_fallthru
      _
    // Predicated region
    $region14: #{tpu_custom_call.1} parent=1 // pred_check
      _
    $region15: #{tpu_custom_call.1} parent=1 // pred_check_branch
      %48 = sbr.rel (0) target = $region17
    $region16: #{tpu_custom_call.1} parent=1 // pred_region
      %49 = dma.done [#allocation3], 512
    $region17: #{tpu_custom_call.1} parent=1 // pred_fallthru
      _
    // Predicated region
    $region18: #{tpu_custom_call.1} parent=1 // pred_check
      _
    $region19: #{tpu_custom_call.1} parent=1 // pred_check_branch
      %51 = sbr.rel (0) target = $region21
    $region20: #{tpu_custom_call.1} parent=1 // pred_region
      %52 = dma.done [#allocation6], 1536
    $region21: #{tpu_custom_call.1} parent=1 // pred_fallthru
      _
    // Predicated region
    $region22: #{tpu_custom_call.1} parent=1 // pred_check
      _
    $region23: #{tpu_custom_call.1} parent=1 // pred_check_branch
      %54 = sbr.rel (0) target = $region25
    $region24: #{tpu_custom_call.1} parent=1 // pred_region
      %55 = dma.done [#allocation6], 1152
    $region25: #{tpu_custom_call.1} parent=1 // pred_fallthru
      _
    %v57 = vld [vmem:[#allocation2] sm:$0xf]
    %v58 = vld [vmem:[#allocation2 + $0x4] sm:$0xf]
    %v59 = vld [vmem:[#allocation2 + $0x8] sm:$0xf]
    %v60 = vld [vmem:[#allocation2 + $0xc] sm:$0xf]
    %v61 = vld [vmem:[#allocation2 + $0x10] sm:$0xf]
    %v62 = vld [vmem:[#allocation2 + $0x14] sm:$0xf]
    %v63 = vld [vmem:[#allocation2 + $0x18] sm:$0xf]
    %v64 = vld [vmem:[#allocation2 + $0x1c] sm:$0xf]
    %v65 = vld [vmem:[#allocation5] sm:$0xf]
    %v66 = vld [vmem:[#allocation5 + $0x4] sm:$0xf]
    %v67 = vld [vmem:[#allocation5 + $0x8] sm:$0xf]
    %v68 = vld [vmem:[#allocation5 + $0xc] sm:$0xf]
    %v69 = vld [vmem:[#allocation5 + $0x10] sm:$0xf]
    %v70 = vld [vmem:[#allocation5 + $0x14] sm:$0xf]
    %v71 = vld [vmem:[#allocation5 + $0x18] sm:$0xf]
    %v72 = vld [vmem:[#allocation5 + $0x1c] sm:$0xf]
    %v73 = vld [vmem:[#allocation5 + $0x20] sm:$0xf]
    %v74 = vld [vmem:[#allocation5 + $0x24] sm:$0xf]
    %v75 = vld [vmem:[#allocation5 + $0x28] sm:$0xf]
    %v76 = vld [vmem:[#allocation5 + $0x2c] sm:$0xf]
    %v77 = vld [vmem:[#allocation5 + $0x30] sm:$0xf]
    %v78 = vld [vmem:[#allocation5 + $0x34] sm:$0xf]
    %v79 = vld [vmem:[#allocation5 + $0x38] sm:$0xf]
    %v80 = vld [vmem:[#allocation5 + $0x3c] sm:$0xf]
    %v81 = vld [vmem:[#allocation7] sm:$0xff]
    %v82 = vld [vmem:[#allocation7 + $0x8] sm:$0xff]
    %v83 = vld [vmem:[#allocation7 + $0x10] sm:$0xff]
    %v84 = vld [vmem:[#allocation7 + $0x18] sm:$0xff]
    %v85 = vld [vmem:[#allocation7 + $0x20] sm:$0xff]
    %v86 = vld [vmem:[#allocation7 + $0x28] sm:$0xff]
    %v87 = vld [vmem:[#allocation7 + $0x30] sm:$0xff]
    %v88 = vld [vmem:[#allocation7 + $0x38] sm:$0xff]
    %v97 = vunpack.c.l.b16 %v57
    %v98 = vunpack.c.l.b16 %v58
    %v99 = vunpack.c.l.b16 %v59
    %v100 = vunpack.c.l.b16 %v60
    %v101 = vunpack.c.l.b16 %v61
    %v102 = vunpack.c.l.b16 %v62
    %v103 = vunpack.c.l.b16 %v63
    %v104 = vunpack.c.l.b16 %v64
    %v105 = vpack.c.b16 %v98, %v97
    %v106 = vpack.c.b16 %v100, %v99
    %v107 = vpack.c.b16 %v102, %v101
    %v108 = vpack.c.b16 %v104, %v103
    %v129 = vunpack.c.l.b16 %v65
    %v130 = vunpack.c.l.b16 %v66
    %v131 = vunpack.c.l.b16 %v67
    %v132 = vunpack.c.l.b16 %v68
    %v133 = vunpack.c.l.b16 %v69
    %v134 = vunpack.c.l.b16 %v70
    %v135 = vunpack.c.l.b16 %v71
    %v136 = vunpack.c.l.b16 %v72
    %v137 = vunpack.c.l.b16 %v73
    %v138 = vunpack.c.l.b16 %v74
    %v139 = vunpack.c.l.b16 %v75
    %v140 = vunpack.c.l.b16 %v76
    %v141 = vunpack.c.l.b16 %v77
    %v142 = vunpack.c.l.b16 %v78
    %v143 = vunpack.c.l.b16 %v79
    %v144 = vunpack.c.l.b16 %v80
    %v145 = vpack.c.b16 %v130, %v129
    %v146 = vpack.c.b16 %v132, %v131
    %v147 = vpack.c.b16 %v134, %v133
    %v148 = vpack.c.b16 %v136, %v135
    %v149 = vpack.c.b16 %v138, %v137
    %v150 = vpack.c.b16 %v140, %v139
    %v151 = vpack.c.b16 %v142, %v141
    %v152 = vpack.c.b16 %v144, %v143
    %161 = vmatprep.subr.bf16.mxu0 0
    %162 = vmatpush1.bf16.msra.mxu0 %v145
    %163 = vmatprep.subr.bf16.mxu0 0
    %164 = vmatpush1.bf16.msra.mxu0 %v146
    %165 = vmatprep.subr.bf16.mxu0 0
    %166 = vmatpush1.bf16.msra.mxu0 %v147
    %167 = vmatprep.subr.bf16.mxu0 0
    %168 = vmatpush1.bf16.msra.mxu0 %v148
    %169 = vmatprep.subr.bf16.mxu0 0
    %170 = vmatpush1.bf16.msra.mxu0 %v149
    %171 = vmatprep.subr.bf16.mxu0 0
    %172 = vmatpush1.bf16.msra.mxu0 %v150
    %173 = vmatprep.subr.bf16.mxu0 0
    %174 = vmatpush1.bf16.msra.mxu0 %v151
    %175 = vmatprep.subr.bf16.mxu0 0
    %176 = vmatpush1.bf16.msra.mxu0 %v152
    %177 = vmatprep.subr.bf16.mxu0 0
    %178 = vmatpush1.bf16.msra.mxu0 0
    %179 = vmatprep.subr.bf16.mxu0 0
    %180 = vmatpush1.bf16.msra.mxu0 0
    %181 = vmatprep.subr.bf16.mxu0 0
    %182 = vmatpush1.bf16.msra.mxu0 0
    %183 = vmatprep.subr.bf16.mxu0 0
    %184 = vmatpush1.bf16.msra.mxu0 0
    %185 = vmatprep.subr.bf16.mxu0 0
    %186 = vmatpush1.bf16.msra.mxu0 0
    %187 = vmatprep.subr.bf16.mxu0 0
    %188 = vmatpush1.bf16.msra.mxu0 0
    %189 = vmatprep.subr.bf16.mxu0 0
    %190 = vmatpush1.bf16.msra.mxu0 0
    %191 = vmatprep.subr.bf16.mxu0 0
    %192 = vmatpush1.bf16.msra.mxu0 0
    %193 = vmatprep.mubr.bf16.mxu0 0
    %194 = vmatmul.mubr.bf16.gmra.mrb[0].mxu0 %v105
    %v195 = vpop.f32.mrb[0].mxu0
    %v196 = vadd.f32 %v81, %v195
    %v197 = vpop.f32.mrb[0].mxu0
    %v198 = vpop.f32.mrb[0].mxu0
    %v199 = vadd.f32 %v82, %v198
    %v200 = vpop.f32.mrb[0].mxu0
    %201 = vmatprep.mubr.bf16.mxu0 0
    %202 = vmatmul.mubr.bf16.gmra.mrb[0].mxu0 %v106
    %v203 = vpop.f32.mrb[0].mxu0
    %v204 = vadd.f32 %v83, %v203
    %v205 = vpop.f32.mrb[0].mxu0
    %v206 = vpop.f32.mrb[0].mxu0
    %v207 = vadd.f32 %v84, %v206
    %v208 = vpop.f32.mrb[0].mxu0
    %209 = vmatprep.mubr.bf16.mxu0 0
    %210 = vmatmul.mubr.bf16.gmra.mrb[0].mxu0 %v107
    %v211 = vpop.f32.mrb[0].mxu0
    %v212 = vadd.f32 %v85, %v211
    %v213 = vpop.f32.mrb[0].mxu0
    %v214 = vpop.f32.mrb[0].mxu0
    %v215 = vadd.f32 %v86, %v214
    %v216 = vpop.f32.mrb[0].mxu0
    %217 = vmatprep.mubr.bf16.mxu0 0
    %218 = vmatmul.mubr.bf16.gmra.mrb[0].mxu0 %v108
    %v219 = vpop.f32.mrb[0].mxu0
    %v220 = vadd.f32 %v87, %v219
    %v221 = vpop.f32.mrb[0].mxu0
    %v222 = vpop.f32.mrb[0].mxu0
    %v223 = vadd.f32 %v88, %v222
    %v224 = vpop.f32.mrb[0].mxu0
    %225 = vdwg.mxu0
    %v226 = vld [vmem:[#allocation7 + $0x40] sm:$0x1]
    %v227 = vpack.c.bf16 %v199, %v196
    %v228 = vpack.c.bf16 %v207, %v204
    %v229 = vpack.c.bf16 %v196, %v196
    %231 = vrot.lane.b32.xlu0 %v229, 112
    %v232 = vpop.permute.xlu0 %231
    %vm233 = vcmask 130048
    %v235 = vsel %vm233, %v227, 0
    %v238 = vsel %vm233, %v228, 0
    %v241 = vsel %vm233, %v232, 0
    %243 = vmatprep.subr.bf16.mxu0 0
    %244 = vmatpush1.bf16.xpose.msra.mxu0 %v241
    %245 = vmatprep.subr.bf16.mxu0 0
    %246 = vmatpush1.bf16.xpose.msra.mxu0 0
    %247 = vmatprep.subr.bf16.mxu0 0
    %248 = vmatpush1.bf16.xpose.msra.mxu0 0
    %249 = vmatprep.subr.bf16.mxu0 0
    %250 = vmatpush1.bf16.xpose.msra.mxu0 0
    %251 = vmatprep.subr.bf16.mxu0 0
    %252 = vmatpush1.bf16.xpose.msra.mxu0 0
    %253 = vmatprep.subr.bf16.mxu0 0
    %254 = vmatpush1.bf16.xpose.msra.mxu0 0
    %255 = vmatprep.subr.bf16.mxu0 0
    %256 = vmatpush1.bf16.xpose.msra.mxu0 0
    %257 = vmatprep.subr.bf16.mxu0 0
    %258 = vmatpush1.bf16.xpose.msra.mxu0 0
    %259 = vmatprep.subr.bf16.mxu0 0
    %260 = vmatpush1.bf16.xpose.msra.mxu0 0
    %261 = vmatprep.subr.bf16.mxu0 0
    %262 = vmatpush1.bf16.xpose.msra.mxu0 0
    %263 = vmatprep.subr.bf16.mxu0 0
    %264 = vmatpush1.bf16.xpose.msra.mxu0 0
    %265 = vmatprep.subr.bf16.mxu0 0
    %266 = vmatpush1.bf16.xpose.msra.mxu0 0
    %267 = vmatprep.subr.bf16.mxu0 0
    %268 = vmatpush1.bf16.xpose.msra.mxu0 0
    %269 = vmatprep.subr.bf16.mxu0 0
    %270 = vmatpush1.bf16.xpose.msra.mxu0 0
    %271 = vmatprep.subr.bf16.mxu0 0
    %272 = vmatpush1.bf16.xpose.msra.mxu0 0
    %273 = vmatprep.subr.bf16.mxu0 0
    %274 = vmatpush1.bf16.xpose.msra.mxu0 0
    %275 = vmatprep.mubr.bf16.mxu0 0
    %276 = vmatmul.mubr.bf16.gmra.mrb[0].mxu0 %v235
    %v277 = vpop.f32.mrb[0].mxu0
    %v278 = vadd.f32 0.0, %v277
    %v279 = vpop.f32.mrb[0].mxu0
    %v280 = vpop.f32.mrb[0].mxu0
    %v281 = vadd.f32 0.0, %v280
    %v282 = vpop.f32.mrb[0].mxu0
    %283 = vmatprep.mubr.bf16.mxu0 0
    %284 = vmatmul.mubr.bf16.gmra.mrb[0].mxu0 %v238
    %v285 = vpop.f32.mrb[0].mxu0
    %v286 = vadd.f32 0.0, %v285
    %v287 = vpop.f32.mrb[0].mxu0
    %v288 = vpop.f32.mrb[0].mxu0
    %v289 = vadd.f32 0.0, %v288
    %v290 = vpop.f32.mrb[0].mxu0
    %291 = vdwg.mxu0
    %vm292 = vcmask 64512
    %v293 = vsel %vm292, %v278, -inf
    %294 = vmax.xlane.f32.xlu0 %v293
    %v295 = vpop.xlane.xlu0 %294
    %v296 = vsel %vm292, %v281, -inf
    %297 = vmax.xlane.f32.xlu0 %v296
    %v298 = vpop.xlane.xlu0 %297
    %v299 = vsel %vm292, %v286, -inf
    %300 = vmax.xlane.f32.xlu0 %v299
    %v301 = vpop.xlane.xlu0 %300
    %v302 = vsel %vm292, %v289, -inf
    %303 = vmax.xlane.f32.xlu0 %v302
    %v304 = vpop.xlane.xlu0 %303
    %v305 = vsub.f32 %v278, %v295
    %v306 = vsub.f32 %v281, %v298
    %v307 = vsub.f32 %v286, %v301
    %v308 = vsub.f32 %v289, %v304
    %v309 = vmul.f32 %v305, 1.442695
    %v310 = vpow.pop %v309
    %v311 = vmul.f32 %v306, 1.442695
    %v312 = vpow.pop %v311
    %v313 = vmul.f32 %v307, 1.442695
    %v314 = vpow.pop %v313
    %v315 = vmul.f32 %v308, 1.442695
    %v316 = vpow.pop %v315
    %v317 = vsel %vm292, %v310, 0.0
    %318 = vadd.xlane.f32.xlu0 %v317
    %v319 = vpop.xlane.xlu0 %318
    %v320 = vsel %vm292, %v312, 0.0
    %321 = vadd.xlane.f32.xlu0 %v320
    %v322 = vpop.xlane.xlu0 %321
    %v323 = vsel %vm292, %v314, 0.0
    %324 = vadd.xlane.f32.xlu0 %v323
    %v325 = vpop.xlane.xlu0 %324
    %v326 = vsel %vm292, %v316, 0.0
    %327 = vadd.xlane.f32.xlu0 %v326
    %v328 = vpop.xlane.xlu0 %327
    %v329 = vrcp.pop %v319
    %v330 = vrcp.pop %v322
    %v331 = vrcp.pop %v325
    %v332 = vrcp.pop %v328
    %v333 = vmul.f32 %v310, %v329
    %v334 = vmul.f32 %v312, %v330
    %v335 = vmul.f32 %v314, %v331
    %v336 = vmul.f32 %v316, %v332
    %v337 = vpack.c.bf16 %v334, %v333
    %v338 = vpack.c.bf16 %v336, %v335
    %339 = vrot.lane.b32.xlu0 %v229, 96
    %v340 = vpop.permute.xlu0 %339
    %v342 = vsel %vm292, %v337, 0
    %v345 = vsel %vm292, %v338, 0
    %vm347 = vcmask 1043456
    %v349 = vsel %vm347, %v340, 0
    %351 = vmatprep.subr.bf16.mxu0 0
    %352 = vmatpush1.bf16.msra.mxu0 %v349
    %353 = vmatprep.subr.bf16.mxu0 0
    %354 = vmatpush1.bf16.msra.mxu0 0
    %355 = vmatprep.subr.bf16.mxu0 0
    %356 = vmatpush1.bf16.msra.mxu0 0
    %357 = vmatprep.subr.bf16.mxu0 0
    %358 = vmatpush1.bf16.msra.mxu0 0
    %359 = vmatprep.subr.bf16.mxu0 0
    %360 = vmatpush1.bf16.msra.mxu0 0
    %361 = vmatprep.subr.bf16.mxu0 0
    %362 = vmatpush1.bf16.msra.mxu0 0
    %363 = vmatprep.subr.bf16.mxu0 0
    %364 = vmatpush1.bf16.msra.mxu0 0
    %365 = vmatprep.subr.bf16.mxu0 0
    %366 = vmatpush1.bf16.msra.mxu0 0
    %367 = vmatprep.subr.bf16.mxu0 0
    %368 = vmatpush1.bf16.msra.mxu0 0
    %369 = vmatprep.subr.bf16.mxu0 0
    %370 = vmatpush1.bf16.msra.mxu0 0
    %371 = vmatprep.subr.bf16.mxu0 0
    %372 = vmatpush1.bf16.msra.mxu0 0
    %373 = vmatprep.subr.bf16.mxu0 0
    %374 = vmatpush1.bf16.msra.mxu0 0
    %375 = vmatprep.subr.bf16.mxu0 0
    %376 = vmatpush1.bf16.msra.mxu0 0
    %377 = vmatprep.subr.bf16.mxu0 0
    %378 = vmatpush1.bf16.msra.mxu0 0
    %379 = vmatprep.subr.bf16.mxu0 0
    %380 = vmatpush1.bf16.msra.mxu0 0
    %381 = vmatprep.subr.bf16.mxu0 0
    %382 = vmatpush1.bf16.msra.mxu0 0
    %383 = vmatprep.mubr.bf16.mxu0 0
    %384 = vmatmul.mubr.bf16.gmra.mrb[0].mxu0 %v342
    %v385 = vpop.f32.mrb[0].mxu0
    %v386 = vadd.f32 0.0, %v385
    %v387 = vpop.f32.mrb[0].mxu0
    %v388 = vpop.f32.mrb[0].mxu0
    %v389 = vadd.f32 0.0, %v388
    %v390 = vpop.f32.mrb[0].mxu0
    %391 = vmatprep.mubr.bf16.mxu0 0
    %392 = vmatmul.mubr.bf16.gmra.mrb[0].mxu0 %v345
    %v393 = vpop.f32.mrb[0].mxu0
    %v394 = vadd.f32 0.0, %v393
    %v395 = vpop.f32.mrb[0].mxu0
    %v396 = vpop.f32.mrb[0].mxu0
    %v397 = vadd.f32 0.0, %v396
    %v398 = vpop.f32.mrb[0].mxu0
    %399 = vdwg.mxu0
    %v400 = vpack.c.bf16 %v386, %v386
    %v401 = vld [vmem:[#allocation5 + $0x40] sm:$0xf]
    %v402 = vld [vmem:[#allocation5 + $0x44] sm:$0xf]
    %v405 = vunpack.c.l.b16 %v401
    %v406 = vunpack.c.l.b16 %v402
    %v407 = vpack.c.b16 %v406, %v405
    %v410 = vsel %vm233, %v400, 0
    %412 = vmatprep.subr.bf16.mxu0 0
    %413 = vmatpush1.bf16.msra.mxu0 %v407
    %414 = vmatprep.subr.bf16.mxu0 0
    %415 = vmatpush1.bf16.msra.mxu0 0
    %416 = vmatprep.subr.bf16.mxu0 0
    %417 = vmatpush1.bf16.msra.mxu0 0
    %418 = vmatprep.subr.bf16.mxu0 0
    %419 = vmatpush1.bf16.msra.mxu0 0
    %420 = vmatprep.subr.bf16.mxu0 0
    %421 = vmatpush1.bf16.msra.mxu0 0
    %422 = vmatprep.subr.bf16.mxu0 0
    %423 = vmatpush1.bf16.msra.mxu0 0
    %424 = vmatprep.subr.bf16.mxu0 0
    %425 = vmatpush1.bf16.msra.mxu0 0
    %426 = vmatprep.subr.bf16.mxu0 0
    %427 = vmatpush1.bf16.msra.mxu0 0
    %428 = vmatprep.subr.bf16.mxu0 0
    %429 = vmatpush1.bf16.msra.mxu0 0
    %430 = vmatprep.subr.bf16.mxu0 0
    %431 = vmatpush1.bf16.msra.mxu0 0
    %432 = vmatprep.subr.bf16.mxu0 0
    %433 = vmatpush1.bf16.msra.mxu0 0
    %434 = vmatprep.subr.bf16.mxu0 0
    %435 = vmatpush1.bf16.msra.mxu0 0
    %436 = vmatprep.subr.bf16.mxu0 0
    %437 = vmatpush1.bf16.msra.mxu0 0
    %438 = vmatprep.subr.bf16.mxu0 0
    %439 = vmatpush1.bf16.msra.mxu0 0
    %440 = vmatprep.subr.bf16.mxu0 0
    %441 = vmatpush1.bf16.msra.mxu0 0
    %442 = vmatprep.subr.bf16.mxu0 0
    %443 = vmatpush1.bf16.msra.mxu0 0
    %444 = vmatprep.mubr.bf16.mxu0 0
    %445 = vmatmul.mubr.bf16.gmra.mrb[0].mxu0 %v410
    %v446 = vpop.f32.mrb[0].mxu0
    %v447 = vadd.f32 0.0, %v446
    %v448 = vpop.f32.mrb[0].mxu0
    %v449 = vpop.f32.mrb[0].mxu0
    %v450 = vpop.f32.mrb[0].mxu0
    %451 = vdwg.mxu0
    %v452 = vlaneseq
    %v453 = vshrl.u32 %v452, 7
    %v454 = vsub.s32 0, %v453
    %v455 = vrot.slane %v226, %v454
    %v456 = vadd.f32 %v455, %v447
    %v457 = vpack.c.bf16 %v389, %v389
    %v458 = vld [vmem:[#allocation5 + $0x48] sm:$0xf]
    %v459 = vld [vmem:[#allocation5 + $0x4c] sm:$0xf]
    %v462 = vunpack.c.l.b16 %v458
    %v463 = vunpack.c.l.b16 %v459
    %v464 = vpack.c.b16 %v463, %v462
    %v467 = vsel %vm233, %v457, 0
    %469 = vmatprep.subr.bf16.mxu0 0
    %470 = vmatpush1.bf16.msra.mxu0 %v464
    %471 = vmatprep.subr.bf16.mxu0 0
    %472 = vmatpush1.bf16.msra.mxu0 0
    %473 = vmatprep.subr.bf16.mxu0 0
    %474 = vmatpush1.bf16.msra.mxu0 0
    %475 = vmatprep.subr.bf16.mxu0 0
    %476 = vmatpush1.bf16.msra.mxu0 0
    %477 = vmatprep.subr.bf16.mxu0 0
    %478 = vmatpush1.bf16.msra.mxu0 0
    %479 = vmatprep.subr.bf16.mxu0 0
    %480 = vmatpush1.bf16.msra.mxu0 0
    %481 = vmatprep.subr.bf16.mxu0 0
    %482 = vmatpush1.bf16.msra.mxu0 0
    %483 = vmatprep.subr.bf16.mxu0 0
    %484 = vmatpush1.bf16.msra.mxu0 0
    %485 = vmatprep.subr.bf16.mxu0 0
    %486 = vmatpush1.bf16.msra.mxu0 0
    %487 = vmatprep.subr.bf16.mxu0 0
    %488 = vmatpush1.bf16.msra.mxu0 0
    %489 = vmatprep.subr.bf16.mxu0 0
    %490 = vmatpush1.bf16.msra.mxu0 0
    %491 = vmatprep.subr.bf16.mxu0 0
    %492 = vmatpush1.bf16.msra.mxu0 0
    %493 = vmatprep.subr.bf16.mxu0 0
    %494 = vmatpush1.bf16.msra.mxu0 0
    %495 = vmatprep.subr.bf16.mxu0 0
    %496 = vmatpush1.bf16.msra.mxu0 0
    %497 = vmatprep.subr.bf16.mxu0 0
    %498 = vmatpush1.bf16.msra.mxu0 0
    %499 = vmatprep.subr.bf16.mxu0 0
    %500 = vmatpush1.bf16.msra.mxu0 0
    %501 = vmatprep.mubr.bf16.mxu0 0
    %502 = vmatmul.mubr.bf16.gmra.mrb[0].mxu0 %v467
    %v503 = vpop.f32.mrb[0].mxu0
    %v504 = vadd.f32 0.0, %v503
    %v505 = vpop.f32.mrb[0].mxu0
    %v506 = vpop.f32.mrb[0].mxu0
    %v507 = vpop.f32.mrb[0].mxu0
    %508 = vdwg.mxu0
    %v509 = vadd.f32 %v456, %v504
    %v510 = vpack.c.bf16 %v394, %v394
    %v511 = vld [vmem:[#allocation5 + $0x50] sm:$0xf]
    %v512 = vld [vmem:[#allocation5 + $0x54] sm:$0xf]
    %v515 = vunpack.c.l.b16 %v511
    %v516 = vunpack.c.l.b16 %v512
    %v517 = vpack.c.b16 %v516, %v515
    %v520 = vsel %vm233, %v510, 0
    %522 = vmatprep.subr.bf16.mxu0 0
    %523 = vmatpush1.bf16.msra.mxu0 %v517
    %524 = vmatprep.subr.bf16.mxu0 0
    %525 = vmatpush1.bf16.msra.mxu0 0
    %526 = vmatprep.subr.bf16.mxu0 0
    %527 = vmatpush1.bf16.msra.mxu0 0
    %528 = vmatprep.subr.bf16.mxu0 0
    %529 = vmatpush1.bf16.msra.mxu0 0
    %530 = vmatprep.subr.bf16.mxu0 0
    %531 = vmatpush1.bf16.msra.mxu0 0
    %532 = vmatprep.subr.bf16.mxu0 0
    %533 = vmatpush1.bf16.msra.mxu0 0
    %534 = vmatprep.subr.bf16.mxu0 0
    %535 = vmatpush1.bf16.msra.mxu0 0
    %536 = vmatprep.subr.bf16.mxu0 0
    %537 = vmatpush1.bf16.msra.mxu0 0
    %538 = vmatprep.subr.bf16.mxu0 0
    %539 = vmatpush1.bf16.msra.mxu0 0
    %540 = vmatprep.subr.bf16.mxu0 0
    %541 = vmatpush1.bf16.msra.mxu0 0
    %542 = vmatprep.subr.bf16.mxu0 0
    %543 = vmatpush1.bf16.msra.mxu0 0
    %544 = vmatprep.subr.bf16.mxu0 0
    %545 = vmatpush1.bf16.msra.mxu0 0
    %546 = vmatprep.subr.bf16.mxu0 0
    %547 = vmatpush1.bf16.msra.mxu0 0
    %548 = vmatprep.subr.bf16.mxu0 0
    %549 = vmatpush1.bf16.msra.mxu0 0
    %550 = vmatprep.subr.bf16.mxu0 0
    %551 = vmatpush1.bf16.msra.mxu0 0
    %552 = vmatprep.subr.bf16.mxu0 0
    %553 = vmatpush1.bf16.msra.mxu0 0
    %554 = vmatprep.mubr.bf16.mxu0 0
    %555 = vmatmul.mubr.bf16.gmra.mrb[0].mxu0 %v520
    %v556 = vpop.f32.mrb[0].mxu0
    %v557 = vadd.f32 0.0, %v556
    %v558 = vpop.f32.mrb[0].mxu0
    %v559 = vpop.f32.mrb[0].mxu0
    %v560 = vpop.f32.mrb[0].mxu0
    %561 = vdwg.mxu0
    %v562 = vadd.f32 %v509, %v557
    %v563 = vpack.c.bf16 %v397, %v397
    %v564 = vld [vmem:[#allocation5 + $0x58] sm:$0xf]
    %v565 = vld [vmem:[#allocation5 + $0x5c] sm:$0xf]
    %v568 = vunpack.c.l.b16 %v564
    %v569 = vunpack.c.l.b16 %v565
    %v570 = vpack.c.b16 %v569, %v568
    %v573 = vsel %vm233, %v563, 0
    %575 = vmatprep.subr.bf16.mxu0 0
    %576 = vmatpush1.bf16.msra.mxu0 %v570
    %577 = vmatprep.subr.bf16.mxu0 0
    %578 = vmatpush1.bf16.msra.mxu0 0
    %579 = vmatprep.subr.bf16.mxu0 0
    %580 = vmatpush1.bf16.msra.mxu0 0
    %581 = vmatprep.subr.bf16.mxu0 0
    %582 = vmatpush1.bf16.msra.mxu0 0
    %583 = vmatprep.subr.bf16.mxu0 0
    %584 = vmatpush1.bf16.msra.mxu0 0
    %585 = vmatprep.subr.bf16.mxu0 0
    %586 = vmatpush1.bf16.msra.mxu0 0
    %587 = vmatprep.subr.bf16.mxu0 0
    %588 = vmatpush1.bf16.msra.mxu0 0
    %589 = vmatprep.subr.bf16.mxu0 0
    %590 = vmatpush1.bf16.msra.mxu0 0
    %591 = vmatprep.subr.bf16.mxu0 0
    %592 = vmatpush1.bf16.msra.mxu0 0
    %593 = vmatprep.subr.bf16.mxu0 0
    %594 = vmatpush1.bf16.msra.mxu0 0
    %595 = vmatprep.subr.bf16.mxu0 0
    %596 = vmatpush1.bf16.msra.mxu0 0
    %597 = vmatprep.subr.bf16.mxu0 0
    %598 = vmatpush1.bf16.msra.mxu0 0
    %599 = vmatprep.subr.bf16.mxu0 0
    %600 = vmatpush1.bf16.msra.mxu0 0
    %601 = vmatprep.subr.bf16.mxu0 0
    %602 = vmatpush1.bf16.msra.mxu0 0
    %603 = vmatprep.subr.bf16.mxu0 0
    %604 = vmatpush1.bf16.msra.mxu0 0
    %605 = vmatprep.subr.bf16.mxu0 0
    %606 = vmatpush1.bf16.msra.mxu0 0
    %607 = vmatprep.mubr.bf16.mxu0 0
    %608 = vmatmul.mubr.bf16.gmra.mrb[0].mxu0 %v573
    %v609 = vpop.f32.mrb[0].mxu0
    %v610 = vadd.f32 0.0, %v609
    %v611 = vpop.f32.mrb[0].mxu0
    %v612 = vpop.f32.mrb[0].mxu0
    %v613 = vpop.f32.mrb[0].mxu0
    %614 = vdwg.mxu0
    %v615 = vadd.f32 %v562, %v610
    %616 = vst [vmem:[#allocation8] sm:$0xff] %v615
    %v617 = vpack.c.bf16 %v215, %v212
    %v618 = vpack.c.bf16 %v223, %v220
    %v619 = vpack.c.bf16 %v212, %v212
    %621 = vrot.lane.b32.xlu0 %v619, 112
    %v622 = vpop.permute.xlu0 %621
    %v624 = vsel %vm233, %v617, 0
    %v627 = vsel %vm233, %v618, 0
    %v630 = vsel %vm233, %v622, 0
    %632 = vmatprep.subr.bf16.mxu0 0
    %633 = vmatpush1.bf16.xpose.msra.mxu0 %v630
    %634 = vmatprep.subr.bf16.mxu0 0
    %635 = vmatpush1.bf16.xpose.msra.mxu0 0
    %636 = vmatprep.subr.bf16.mxu0 0
    %637 = vmatpush1.bf16.xpose.msra.mxu0 0
    %638 = vmatprep.subr.bf16.mxu0 0
    %639 = vmatpush1.bf16.xpose.msra.mxu0 0
    %640 = vmatprep.subr.bf16.mxu0 0
    %641 = vmatpush1.bf16.xpose.msra.mxu0 0
    %642 = vmatprep.subr.bf16.mxu0 0
    %643 = vmatpush1.bf16.xpose.msra.mxu0 0
    %644 = vmatprep.subr.bf16.mxu0 0
    %645 = vmatpush1.bf16.xpose.msra.mxu0 0
    %646 = vmatprep.subr.bf16.mxu0 0
    %647 = vmatpush1.bf16.xpose.msra.mxu0 0
    %648 = vmatprep.subr.bf16.mxu0 0
    %649 = vmatpush1.bf16.xpose.msra.mxu0 0
    %650 = vmatprep.subr.bf16.mxu0 0
    %651 = vmatpush1.bf16.xpose.msra.mxu0 0
    %652 = vmatprep.subr.bf16.mxu0 0
    %653 = vmatpush1.bf16.xpose.msra.mxu0 0
    %654 = vmatprep.subr.bf16.mxu0 0
    %655 = vmatpush1.bf16.xpose.msra.mxu0 0
    %656 = vmatprep.subr.bf16.mxu0 0
    %657 = vmatpush1.bf16.xpose.msra.mxu0 0
    %658 = vmatprep.subr.bf16.mxu0 0
    %659 = vmatpush1.bf16.xpose.msra.mxu0 0
    %660 = vmatprep.subr.bf16.mxu0 0
    %661 = vmatpush1.bf16.xpose.msra.mxu0 0
    %662 = vmatprep.subr.bf16.mxu0 0
    %663 = vmatpush1.bf16.xpose.msra.mxu0 0
    %664 = vmatprep.mubr.bf16.mxu0 0
    %665 = vmatmul.mubr.bf16.gmra.mrb[0].mxu0 %v624
    %v666 = vpop.f32.mrb[0].mxu0
    %v667 = vadd.f32 0.0, %v666
    %v668 = vpop.f32.mrb[0].mxu0
    %v669 = vpop.f32.mrb[0].mxu0
    %v670 = vadd.f32 0.0, %v669
    %v671 = vpop.f32.mrb[0].mxu0
    %672 = vmatprep.mubr.bf16.mxu0 0
    %673 = vmatmul.mubr.bf16.gmra.mrb[0].mxu0 %v627
    %v674 = vpop.f32.mrb[0].mxu0
    %v675 = vadd.f32 0.0, %v674
    %v676 = vpop.f32.mrb[0].mxu0
    %v677 = vpop.f32.mrb[0].mxu0
    %v678 = vadd.f32 0.0, %v677
    %v679 = vpop.f32.mrb[0].mxu0
    %680 = vdwg.mxu0
    %v681 = vsel %vm292, %v667, -inf
    %682 = vmax.xlane.f32.xlu0 %v681
    %v683 = vpop.xlane.xlu0 %682
    %v684 = vsel %vm292, %v670, -inf
    %685 = vmax.xlane.f32.xlu0 %v684
    %v686 = vpop.xlane.xlu0 %685
    %v687 = vsel %vm292, %v675, -inf
    %688 = vmax.xlane.f32.xlu0 %v687
    %v689 = vpop.xlane.xlu0 %688
    %v690 = vsel %vm292, %v678, -inf
    %691 = vmax.xlane.f32.xlu0 %v690
    %v692 = vpop.xlane.xlu0 %691
    %v693 = vsub.f32 %v667, %v683
    %v694 = vsub.f32 %v670, %v686
    %v695 = vsub.f32 %v675, %v689
    %v696 = vsub.f32 %v678, %v692
    %v697 = vmul.f32 %v693, 1.442695
    %v698 = vpow.pop %v697
    %v699 = vmul.f32 %v694, 1.442695
    %v700 = vpow.pop %v699
    %v701 = vmul.f32 %v695, 1.442695
    %v702 = vpow.pop %v701
    %v703 = vmul.f32 %v696, 1.442695
    %v704 = vpow.pop %v703
    %v705 = vsel %vm292, %v698, 0.0
    %706 = vadd.xlane.f32.xlu0 %v705
    %v707 = vpop.xlane.xlu0 %706
    %v708 = vsel %vm292, %v700, 0.0
    %709 = vadd.xlane.f32.xlu0 %v708
    %v710 = vpop.xlane.xlu0 %709
    %v711 = vsel %vm292, %v702, 0.0
    %712 = vadd.xlane.f32.xlu0 %v711
    %v713 = vpop.xlane.xlu0 %712
    %v714 = vsel %vm292, %v704, 0.0
    %715 = vadd.xlane.f32.xlu0 %v714
    %v716 = vpop.xlane.xlu0 %715
    %v717 = vrcp.pop %v707
    %v718 = vrcp.pop %v710
    %v719 = vrcp.pop %v713
    %v720 = vrcp.pop %v716
    %v721 = vmul.f32 %v698, %v717
    %v722 = vmul.f32 %v700, %v718
    %v723 = vmul.f32 %v702, %v719
    %v724 = vmul.f32 %v704, %v720
    %v725 = vpack.c.bf16 %v722, %v721
    %v726 = vpack.c.bf16 %v724, %v723
    %727 = vrot.lane.b32.xlu0 %v619, 96
    %v728 = vpop.permute.xlu0 %727
    %v730 = vsel %vm292, %v725, 0
    %v733 = vsel %vm292, %v726, 0
    %v736 = vsel %vm347, %v728, 0
    %738 = vmatprep.subr.bf16.mxu0 0
    %739 = vmatpush1.bf16.msra.mxu0 %v736
    %740 = vmatprep.subr.bf16.mxu0 0
    %741 = vmatpush1.bf16.msra.mxu0 0
    %742 = vmatprep.subr.bf16.mxu0 0
    %743 = vmatpush1.bf16.msra.mxu0 0
    %744 = vmatprep.subr.bf16.mxu0 0
    %745 = vmatpush1.bf16.msra.mxu0 0
    %746 = vmatprep.subr.bf16.mxu0 0
    %747 = vmatpush1.bf16.msra.mxu0 0
    %748 = vmatprep.subr.bf16.mxu0 0
    %749 = vmatpush1.bf16.msra.mxu0 0
    %750 = vmatprep.subr.bf16.mxu0 0
    %751 = vmatpush1.bf16.msra.mxu0 0
    %752 = vmatprep.subr.bf16.mxu0 0
    %753 = vmatpush1.bf16.msra.mxu0 0
    %754 = vmatprep.subr.bf16.mxu0 0
    %755 = vmatpush1.bf16.msra.mxu0 0
    %756 = vmatprep.subr.bf16.mxu0 0
    %757 = vmatpush1.bf16.msra.mxu0 0
    %758 = vmatprep.subr.bf16.mxu0 0
    %759 = vmatpush1.bf16.msra.mxu0 0
    %760 = vmatprep.subr.bf16.mxu0 0
    %761 = vmatpush1.bf16.msra.mxu0 0
    %762 = vmatprep.subr.bf16.mxu0 0
    %763 = vmatpush1.bf16.msra.mxu0 0
    %764 = vmatprep.subr.bf16.mxu0 0
    %765 = vmatpush1.bf16.msra.mxu0 0
    %766 = vmatprep.subr.bf16.mxu0 0
    %767 = vmatpush1.bf16.msra.mxu0 0
    %768 = vmatprep.subr.bf16.mxu0 0
    %769 = vmatpush1.bf16.msra.mxu0 0
    %770 = vmatprep.mubr.bf16.mxu0 0
    %771 = vmatmul.mubr.bf16.gmra.mrb[0].mxu0 %v730
    %v772 = vpop.f32.mrb[0].mxu0
    %v773 = vadd.f32 0.0, %v772
    %v774 = vpop.f32.mrb[0].mxu0
    %v775 = vpop.f32.mrb[0].mxu0
    %v776 = vadd.f32 0.0, %v775
    %v777 = vpop.f32.mrb[0].mxu0
    %778 = vmatprep.mubr.bf16.mxu0 0
    %779 = vmatmul.mubr.bf16.gmra.mrb[0].mxu0 %v733
    %v780 = vpop.f32.mrb[0].mxu0
    %v781 = vadd.f32 0.0, %v780
    %v782 = vpop.f32.mrb[0].mxu0
    %v783 = vpop.f32.mrb[0].mxu0
    %v784 = vadd.f32 0.0, %v783
    %v785 = vpop.f32.mrb[0].mxu0
    %786 = vdwg.mxu0
    %v787 = vpack.c.bf16 %v773, %v773
    %v788 = vld [vmem:[#allocation5 + $0x40] sm:$0xf]
    %v789 = vld [vmem:[#allocation5 + $0x44] sm:$0xf]
    %v792 = vunpack.c.l.b16 %v788
    %v793 = vunpack.c.l.b16 %v789
    %v794 = vpack.c.b16 %v793, %v792
    %v797 = vsel %vm233, %v787, 0
    %799 = vmatprep.subr.bf16.mxu0 0
    %800 = vmatpush1.bf16.msra.mxu0 %v794
    %801 = vmatprep.subr.bf16.mxu0 0
    %802 = vmatpush1.bf16.msra.mxu0 0
    %803 = vmatprep.subr.bf16.mxu0 0
    %804 = vmatpush1.bf16.msra.mxu0 0
    %805 = vmatprep.subr.bf16.mxu0 0
    %806 = vmatpush1.bf16.msra.mxu0 0
    %807 = vmatprep.subr.bf16.mxu0 0
    %808 = vmatpush1.bf16.msra.mxu0 0
    %809 = vmatprep.subr.bf16.mxu0 0
    %810 = vmatpush1.bf16.msra.mxu0 0
    %811 = vmatprep.subr.bf16.mxu0 0
    %812 = vmatpush1.bf16.msra.mxu0 0
    %813 = vmatprep.subr.bf16.mxu0 0
    %814 = vmatpush1.bf16.msra.mxu0 0
    %815 = vmatprep.subr.bf16.mxu0 0
    %816 = vmatpush1.bf16.msra.mxu0 0
    %817 = vmatprep.subr.bf16.mxu0 0
    %818 = vmatpush1.bf16.msra.mxu0 0
    %819 = vmatprep.subr.bf16.mxu0 0
    %820 = vmatpush1.bf16.msra.mxu0 0
    %821 = vmatprep.subr.bf16.mxu0 0
    %822 = vmatpush1.bf16.msra.mxu0 0
    %823 = vmatprep.subr.bf16.mxu0 0
    %824 = vmatpush1.bf16.msra.mxu0 0
    %825 = vmatprep.subr.bf16.mxu0 0
    %826 = vmatpush1.bf16.msra.mxu0 0
    %827 = vmatprep.subr.bf16.mxu0 0
    %828 = vmatpush1.bf16.msra.mxu0 0
    %829 = vmatprep.subr.bf16.mxu0 0
    %830 = vmatpush1.bf16.msra.mxu0 0
    %831 = vmatprep.mubr.bf16.mxu0 0
    %832 = vmatmul.mubr.bf16.gmra.mrb[0].mxu0 %v797
    %v833 = vpop.f32.mrb[0].mxu0
    %v834 = vadd.f32 0.0, %v833
    %v835 = vpop.f32.mrb[0].mxu0
    %v836 = vpop.f32.mrb[0].mxu0
    %v837 = vpop.f32.mrb[0].mxu0
    %838 = vdwg.mxu0
    %v839 = vadd.f32 %v455, %v834
    %v840 = vpack.c.bf16 %v776, %v776
    %v841 = vld [vmem:[#allocation5 + $0x48] sm:$0xf]
    %v842 = vld [vmem:[#allocation5 + $0x4c] sm:$0xf]
    %v845 = vunpack.c.l.b16 %v841
    %v846 = vunpack.c.l.b16 %v842
    %v847 = vpack.c.b16 %v846, %v845
    %v850 = vsel %vm233, %v840, 0
    %852 = vmatprep.subr.bf16.mxu0 0
    %853 = vmatpush1.bf16.msra.mxu0 %v847
    %854 = vmatprep.subr.bf16.mxu0 0
    %855 = vmatpush1.bf16.msra.mxu0 0
    %856 = vmatprep.subr.bf16.mxu0 0
    %857 = vmatpush1.bf16.msra.mxu0 0
    %858 = vmatprep.subr.bf16.mxu0 0
    %859 = vmatpush1.bf16.msra.mxu0 0
    %860 = vmatprep.subr.bf16.mxu0 0
    %861 = vmatpush1.bf16.msra.mxu0 0
    %862 = vmatprep.subr.bf16.mxu0 0
    %863 = vmatpush1.bf16.msra.mxu0 0
    %864 = vmatprep.subr.bf16.mxu0 0
    %865 = vmatpush1.bf16.msra.mxu0 0
    %866 = vmatprep.subr.bf16.mxu0 0
    %867 = vmatpush1.bf16.msra.mxu0 0
    %868 = vmatprep.subr.bf16.mxu0 0
    %869 = vmatpush1.bf16.msra.mxu0 0
    %870 = vmatprep.subr.bf16.mxu0 0
    %871 = vmatpush1.bf16.msra.mxu0 0
    %872 = vmatprep.subr.bf16.mxu0 0
    %873 = vmatpush1.bf16.msra.mxu0 0
    %874 = vmatprep.subr.bf16.mxu0 0
    %875 = vmatpush1.bf16.msra.mxu0 0
    %876 = vmatprep.subr.bf16.mxu0 0
    %877 = vmatpush1.bf16.msra.mxu0 0
    %878 = vmatprep.subr.bf16.mxu0 0
    %879 = vmatpush1.bf16.msra.mxu0 0
    %880 = vmatprep.subr.bf16.mxu0 0
    %881 = vmatpush1.bf16.msra.mxu0 0
    %882 = vmatprep.subr.bf16.mxu0 0
    %883 = vmatpush1.bf16.msra.mxu0 0
    %884 = vmatprep.mubr.bf16.mxu0 0
    %885 = vmatmul.mubr.bf16.gmra.mrb[0].mxu0 %v850
    %v886 = vpop.f32.mrb[0].mxu0
    %v887 = vadd.f32 0.0, %v886
    %v888 = vpop.f32.mrb[0].mxu0
    %v889 = vpop.f32.mrb[0].mxu0
    %v890 = vpop.f32.mrb[0].mxu0
    %891 = vdwg.mxu0
    %v892 = vadd.f32 %v839, %v887
    %v893 = vpack.c.bf16 %v781, %v781
    %v894 = vld [vmem:[#allocation5 + $0x50] sm:$0xf]
    %v895 = vld [vmem:[#allocation5 + $0x54] sm:$0xf]
    %v898 = vunpack.c.l.b16 %v894
    %v899 = vunpack.c.l.b16 %v895
    %v900 = vpack.c.b16 %v899, %v898
    %v903 = vsel %vm233, %v893, 0
    %905 = vmatprep.subr.bf16.mxu0 0
    %906 = vmatpush1.bf16.msra.mxu0 %v900
    %907 = vmatprep.subr.bf16.mxu0 0
    %908 = vmatpush1.bf16.msra.mxu0 0
    %909 = vmatprep.subr.bf16.mxu0 0
    %910 = vmatpush1.bf16.msra.mxu0 0
    %911 = vmatprep.subr.bf16.mxu0 0
    %912 = vmatpush1.bf16.msra.mxu0 0
    %913 = vmatprep.subr.bf16.mxu0 0
    %914 = vmatpush1.bf16.msra.mxu0 0
    %915 = vmatprep.subr.bf16.mxu0 0
    %916 = vmatpush1.bf16.msra.mxu0 0
    %917 = vmatprep.subr.bf16.mxu0 0
    %918 = vmatpush1.bf16.msra.mxu0 0
    %919 = vmatprep.subr.bf16.mxu0 0
    %920 = vmatpush1.bf16.msra.mxu0 0
    %921 = vmatprep.subr.bf16.mxu0 0
    %922 = vmatpush1.bf16.msra.mxu0 0
    %923 = vmatprep.subr.bf16.mxu0 0
    %924 = vmatpush1.bf16.msra.mxu0 0
    %925 = vmatprep.subr.bf16.mxu0 0
    %926 = vmatpush1.bf16.msra.mxu0 0
    %927 = vmatprep.subr.bf16.mxu0 0
    %928 = vmatpush1.bf16.msra.mxu0 0
    %929 = vmatprep.subr.bf16.mxu0 0
    %930 = vmatpush1.bf16.msra.mxu0 0
    %931 = vmatprep.subr.bf16.mxu0 0
    %932 = vmatpush1.bf16.msra.mxu0 0
    %933 = vmatprep.subr.bf16.mxu0 0
    %934 = vmatpush1.bf16.msra.mxu0 0
    %935 = vmatprep.subr.bf16.mxu0 0
    %936 = vmatpush1.bf16.msra.mxu0 0
    %937 = vmatprep.mubr.bf16.mxu0 0
    %938 = vmatmul.mubr.bf16.gmra.mrb[0].mxu0 %v903
    %v939 = vpop.f32.mrb[0].mxu0
    %v940 = vadd.f32 0.0, %v939
    %v941 = vpop.f32.mrb[0].mxu0
    %v942 = vpop.f32.mrb[0].mxu0
    %v943 = vpop.f32.mrb[0].mxu0
    %944 = vdwg.mxu0
    %v945 = vadd.f32 %v892, %v940
    %v946 = vpack.c.bf16 %v784, %v784
    %v947 = vld [vmem:[#allocation5 + $0x58] sm:$0xf]
    %v948 = vld [vmem:[#allocation5 + $0x5c] sm:$0xf]
    %v951 = vunpack.c.l.b16 %v947
    %v952 = vunpack.c.l.b16 %v948
    %v953 = vpack.c.b16 %v952, %v951
    %v956 = vsel %vm233, %v946, 0
    %958 = vmatprep.subr.bf16.mxu0 0
    %959 = vmatpush1.bf16.msra.mxu0 %v953
    %960 = vmatprep.subr.bf16.mxu0 0
    %961 = vmatpush1.bf16.msra.mxu0 0
    %962 = vmatprep.subr.bf16.mxu0 0
    %963 = vmatpush1.bf16.msra.mxu0 0
    %964 = vmatprep.subr.bf16.mxu0 0
    %965 = vmatpush1.bf16.msra.mxu0 0
    %966 = vmatprep.subr.bf16.mxu0 0
    %967 = vmatpush1.bf16.msra.mxu0 0
    %968 = vmatprep.subr.bf16.mxu0 0
    %969 = vmatpush1.bf16.msra.mxu0 0
    %970 = vmatprep.subr.bf16.mxu0 0
    %971 = vmatpush1.bf16.msra.mxu0 0
    %972 = vmatprep.subr.bf16.mxu0 0
    %973 = vmatpush1.bf16.msra.mxu0 0
    %974 = vmatprep.subr.bf16.mxu0 0
    %975 = vmatpush1.bf16.msra.mxu0 0
    %976 = vmatprep.subr.bf16.mxu0 0
    %977 = vmatpush1.bf16.msra.mxu0 0
    %978 = vmatprep.subr.bf16.mxu0 0
    %979 = vmatpush1.bf16.msra.mxu0 0
    %980 = vmatprep.subr.bf16.mxu0 0
    %981 = vmatpush1.bf16.msra.mxu0 0
    %982 = vmatprep.subr.bf16.mxu0 0
    %983 = vmatpush1.bf16.msra.mxu0 0
    %984 = vmatprep.subr.bf16.mxu0 0
    %985 = vmatpush1.bf16.msra.mxu0 0
    %986 = vmatprep.subr.bf16.mxu0 0
    %987 = vmatpush1.bf16.msra.mxu0 0
    %988 = vmatprep.subr.bf16.mxu0 0
    %989 = vmatpush1.bf16.msra.mxu0 0
    %990 = vmatprep.mubr.bf16.mxu0 0
    %991 = vmatmul.mubr.bf16.gmra.mrb[0].mxu0 %v956
    %v992 = vpop.f32.mrb[0].mxu0
    %v993 = vadd.f32 0.0, %v992
    %v994 = vpop.f32.mrb[0].mxu0
    %v995 = vpop.f32.mrb[0].mxu0
    %v996 = vpop.f32.mrb[0].mxu0
    %997 = vdwg.mxu0
    %v998 = vadd.f32 %v945, %v993
    %999 = vst [vmem:[#allocation8 + $0x8] sm:$0xff] %v998
    // Predicated region
    $region26: #{tpu_custom_call.1} parent=1 // pred_check
      _
    $region27: #{tpu_custom_call.1} parent=1 // pred_check_branch
      %1001 = sbr.rel (0) target = $region29
    $region28: #{tpu_custom_call.1} parent=1 // pred_region
      %s1003 = ssub.s32 256, 256
      %1004 = vsyncadd [#allocation4], %s1003
      %s1005 = sshll.u32 [#allocation8], 4
      %s1006 = int_to_ptr.vmem [resolvable:$true] %s1005
      %1011 = dma.vmem_to_hbm [thread:$0]  %s1006, 256, %s3, [#allocation4], 128, 128, 8
    $region29: #{tpu_custom_call.1} parent=1 // pred_fallthru
      _
    // Predicated region
    $region30: #{tpu_custom_call.1} parent=1 // pred_check
      _
    $region31: #{tpu_custom_call.1} parent=1 // pred_check_branch
      %1013 = sbr.rel (0) target = $region33
    $region32: #{tpu_custom_call.1} parent=1 // pred_region
      %1014 = dma.done [#allocation4], 256
    $region33: #{tpu_custom_call.1} parent=1 // pred_fallthru
      _
    %1015 = vsyncpa [#allocation3], 1
    %1016 = vsyncpa [#allocation6], 1
    %1017 = vsyncpa [#allocation4], 1

</llo_original>
